<compile_context>
chip_gen: v7x
topology: tpu7x:2x2x1
jax: 0.10.0
libtpu: 0.0.40
codegen_flags: <defaults>
</compile_context>

<pallas_src>
import jax
import jax.numpy as jnp
from jax.experimental import pallas as pl
from jax.experimental.pallas import tpu as pltpu


def _round_up(x, m):
    return (x + m - 1) // m * m


def _model_kernel(x_ref, w1_ref, b1_ref, w2_ref, b2_ref, w3_ref, b3_ref, out_ref):
    wdt = w1_ref.dtype  # bf16 weights; accumulation + elementwise math stay f32

    # Fused layer 1 (block-diagonal W1): both branch Linears + (Dropout==id) + ReLU
    h1 = jnp.dot(x_ref[...], w1_ref[...],
                 preferred_element_type=jnp.float32) + b1_ref[...]
    h1 = jnp.maximum(h1, 0.0)

    # next_state_net layer 1: Linear(hidden, hidden) + ReLU
    h2 = jnp.dot(h1.astype(wdt), w2_ref[...],
                 preferred_element_type=jnp.float32) + b2_ref[...]
    h2 = jnp.maximum(h2, 0.0)

    # next_state_net layer 2: Linear(hidden, state_dim) — unpadded narrow output
    out = jnp.dot(h2.astype(wdt), w3_ref[...],
                  preferred_element_type=jnp.float32) + b3_ref[...]
    out_ref[...] = out.astype(out_ref.dtype)


def prepare_params(params, weight_dtype=jnp.bfloat16):
    """One-time parameter prep: fuse layer-1 weights into a block-diagonal W1,
    reshape biases to (1, N) rows, cast weights to `weight_dtype`.

    Returns (prep_dict_of_arrays, state_dim)."""
    (w1s, b1s, w1a, b1a, w2, b2, w3, b3) = params
    s_in, half = w1s.shape
    a_in = w1a.shape[0]
    hidden = w2.shape[0]
    state_dim = w3.shape[1]

    # Block-diagonal layer-1 weight: concat([state, action]) @ W1
    #   == concat([state @ w1s, action @ w1a], -1)
    w1 = jnp.zeros((s_in + a_in, hidden), jnp.float32)
    w1 = w1.at[:s_in, :half].set(w1s).at[s_in:, half:].set(w1a)
    b1 = jnp.concatenate([b1s, b1a])

    prep = dict(
        w1=w1.astype(weight_dtype),
        b1=b1.reshape(1, -1).astype(jnp.float32),
        w2=w2.astype(weight_dtype),
        b2=b2.reshape(1, -1).astype(jnp.float32),
        w3=w3.astype(weight_dtype),
        b3=b3.reshape(1, -1).astype(jnp.float32),
    )
    return prep, state_dim


def model_network_forward(state, action, prep, state_dim, *, block_b=1024):
    """state: (B, state_dim*n_history), action: (B, action_dim*2) -> (B, state_dim)."""
    B = state.shape[0]

    # Fuse inputs and cast to bf16 once (first in-kernel use is a bf16 dot operand).
    x = jnp.concatenate([state, action], axis=-1).astype(jnp.bfloat16)
    in_dim = x.shape[1]

    # Batch tile: multiple of 16 (bf16 sublane pack). Small-batch fast path:
    # a single tile / single grid step when B fits in block_b.
    tb = min(_round_up(B, 16), _round_up(block_b, 16))
    b_pad = _round_up(B, tb)
    if b_pad != B:
        x = jnp.pad(x, ((0, b_pad - B), (0, 0)))
    grid = (b_pad // tb,)

    def resident_spec(a):
        # Full-array block, same block every grid step -> loaded once, stays in VMEM.
        return pl.BlockSpec(a.shape, lambda i: (0,) * a.ndim)

    weights = (prep["w1"], prep["b1"], prep["w2"], prep["b2"], prep["w3"], prep["b3"])

    out = pl.pallas_call(
        _model_kernel,
        out_shape=jax.ShapeDtypeStruct((b_pad, state_dim), jnp.float32),
        grid=grid,
        in_specs=[pl.BlockSpec((tb, in_dim), lambda i: (i, 0))]
                 + [resident_spec(w) for w in weights],
        out_specs=pl.BlockSpec((tb, state_dim), lambda i: (i, 0)),
        compiler_params=pltpu.CompilerParams(
            dimension_semantics=("parallel",)),
    )(x, *weights)

    return out[:B]


def init_params(key, state_dim, action_dim, hidden_dim, n_history):
    """Deterministic parameter init (shapes match the PyTorch module)."""
    half = hidden_dim // 2
    ks = jax.random.split(key, 8)

    def lin(kw, kb, fan_in, fan_out):
        bound = 1.0 / jnp.sqrt(fan_in)
        w = jax.random.uniform(kw, (fan_in, fan_out), jnp.float32, -bound, bound)
        b = jax.random.uniform(kb, (fan_out,), jnp.float32, -bound, bound)
        return w, b

    w1s, b1s = lin(ks[0], ks[1], state_dim * n_history, half)   # state_net Linear
    w1a, b1a = lin(ks[2], ks[3], action_dim * 2, half)          # action_net Linear
    w2, b2 = lin(ks[4], ks[5], hidden_dim, hidden_dim)          # next_state_net Linear 1
    w3, b3 = lin(ks[6], ks[7], hidden_dim, state_dim)           # next_state_net Linear 2
    return (w1s, b1s, w1a, b1a, w2, b2, w3, b3)


def _ref_forward(state, action, params):
    """Pure-f32 JAX reference (matches the PyTorch eval-mode forward)."""
    (w1s, b1s, w1a, b1a, w2, b2, w3, b3) = params
    h_s = jnp.maximum(state @ w1s + b1s, 0.0)
    h_a = jnp.maximum(action @ w1a + b1a, 0.0)
    h = jnp.concatenate([h_s, h_a], axis=-1)
    h2 = jnp.maximum(h @ w2 + b2, 0.0)
    return h2 @ w3 + b3


def _ref_forward_prepared(state, action, prep):
    """Reference mirroring the kernel's exact precision scheme
    (bf16 inputs/weights at dot boundaries, f32 accumulate & elementwise)."""
    x = jnp.concatenate([state, action], axis=-1).astype(jnp.bfloat16)
    wdt = prep["w1"].dtype
    dot = lambda a, w: jnp.dot(a, w, preferred_element_type=jnp.float32)
    h1 = jnp.maximum(dot(x, prep["w1"]) + prep["b1"], 0.0)
    h2 = jnp.maximum(dot(h1.astype(wdt), prep["w2"]) + prep["b2"], 0.0)
    return dot(h2.astype(wdt), prep["w3"]) + prep["b3"]


if __name__ == "__main__":
    # Small shapes consistent with the module's forward.
    state_dim = 4
    action_dim = 2
    hidden_dim = 32
    n_history = 2
    batch = 50          # deliberately not a multiple of 16

    key = jax.random.PRNGKey(0)
    k_state, k_action, k_params = jax.random.split(key, 3)

    state = jax.random.normal(k_state, (batch, state_dim * n_history), jnp.float32)
    action = jax.random.normal(k_action, (batch, action_dim * 2), jnp.float32)
    params = init_params(k_params, state_dim, action_dim, hidden_dim, n_history)

    # One-time parameter prep (block-diag fuse / reshape / bf16 cast) — out of the hot path.
    prep, sdim = prepare_params(params)

    fwd = jax.jit(model_network_forward, static_argnames=("state_dim", "block_b"))
    out = fwd(state, action, prep, state_dim=sdim)
    out = jax.block_until_ready(out)

    assert out.shape == (batch, state_dim)

    # Tight check against a reference with identical mixed-precision semantics.
    ref_mixed = _ref_forward_prepared(state, action, prep)
    assert jnp.allclose(out, ref_mixed, atol=1e-4, rtol=1e-4)

    # Looser sanity check against the pure-f32 reference (only difference is
    # bf16 rounding of dot operands).
    ref_f32 = _ref_forward(state, action, params)
    assert jnp.allclose(out, ref_f32, atol=1e-1, rtol=1e-1)

    print("KERNEL_OK")
</pallas_src>

<mosaic_0001>
module attributes {stable_mosaic.version = 11 : i64} {
  func.func @_model_kernel(%arg0: i32, %arg1: memref<64x12xbf16, #tpu.memory_space<vmem>>, %arg2: memref<12x32xbf16, #tpu.memory_space<vmem>>, %arg3: memref<1x32xf32, #tpu.memory_space<vmem>>, %arg4: memref<32x32xbf16, #tpu.memory_space<vmem>>, %arg5: memref<1x32xf32, #tpu.memory_space<vmem>>, %arg6: memref<32x4xbf16, #tpu.memory_space<vmem>>, %arg7: memref<1x4xf32, #tpu.memory_space<vmem>>, %arg8: memref<64x4xf32, #tpu.memory_space<vmem>>) attributes {dimension_semantics = [#tpu.dimension_semantics<parallel>], iteration_bounds = array<i64: 1>, scalar_prefetch = 0 : i64, scratch_operands = 0 : i64, tpu.core_type = #tpu.core_type<tc>, window_params = [{transform_indices = @transform_0, window_bounds = array<i64: 64, 12>}, {pipeline_mode = #tpu.pipeline_mode<synchronous>, transform_indices = @transform_1, window_bounds = array<i64: 12, 32>}, {pipeline_mode = #tpu.pipeline_mode<synchronous>, transform_indices = @transform_2, window_bounds = array<i64: 1, 32>}, {pipeline_mode = #tpu.pipeline_mode<synchronous>, transform_indices = @transform_3, window_bounds = array<i64: 32, 32>}, {pipeline_mode = #tpu.pipeline_mode<synchronous>, transform_indices = @transform_4, window_bounds = array<i64: 1, 32>}, {pipeline_mode = #tpu.pipeline_mode<synchronous>, transform_indices = @transform_5, window_bounds = array<i64: 32, 4>}, {pipeline_mode = #tpu.pipeline_mode<synchronous>, transform_indices = @transform_6, window_bounds = array<i64: 1, 4>}, {transform_indices = @transform_7, window_bounds = array<i64: 64, 4>}]} {
    %c0 = arith.constant 0 : index
    %c0_0 = arith.constant 0 : index
    %0 = vector.load %arg1[%c0, %c0_0] : memref<64x12xbf16, #tpu.memory_space<vmem>>, vector<64x12xbf16>
    %c0_1 = arith.constant 0 : index
    %c0_2 = arith.constant 0 : index
    %1 = vector.load %arg2[%c0_1, %c0_2] : memref<12x32xbf16, #tpu.memory_space<vmem>>, vector<12x32xbf16>
    %cst = arith.constant dense<0.000000e+00> : vector<64x32xf32>
    %2 = tpu.matmul %0, %1, %cst {dimension_numbers = #tpu.dot_dimension_numbers<[1], [0], [0], [1], [0, 0, 1, 1], [], []>} : vector<64x12xbf16>, vector<12x32xbf16>, vector<64x32xf32> -> vector<64x32xf32>
    %c0_3 = arith.constant 0 : index
    %c0_4 = arith.constant 0 : index
    %3 = vector.load %arg3[%c0_3, %c0_4] : memref<1x32xf32, #tpu.memory_space<vmem>>, vector<1x32xf32>
    %4 = vector.broadcast %3 : vector<1x32xf32> to vector<64x32xf32>
    %5 = arith.addf %2, %4 : vector<64x32xf32>
    %cst_5 = arith.constant 0.000000e+00 : f32
    %6 = vector.broadcast %cst_5 : f32 to vector<64x32xf32>
    %7 = arith.maximumf %5, %6 : vector<64x32xf32>
    %8 = arith.truncf %7 : vector<64x32xf32> to vector<64x32xbf16>
    %c0_6 = arith.constant 0 : index
    %c0_7 = arith.constant 0 : index
    %9 = vector.load %arg4[%c0_6, %c0_7] : memref<32x32xbf16, #tpu.memory_space<vmem>>, vector<32x32xbf16>
    %cst_8 = arith.constant dense<0.000000e+00> : vector<64x32xf32>
    %10 = tpu.matmul %8, %9, %cst_8 {dimension_numbers = #tpu.dot_dimension_numbers<[1], [0], [0], [1], [0, 0, 1, 1], [], []>} : vector<64x32xbf16>, vector<32x32xbf16>, vector<64x32xf32> -> vector<64x32xf32>
    %c0_9 = arith.constant 0 : index
    %c0_10 = arith.constant 0 : index
    %11 = vector.load %arg5[%c0_9, %c0_10] : memref<1x32xf32, #tpu.memory_space<vmem>>, vector<1x32xf32>
    %12 = vector.broadcast %11 : vector<1x32xf32> to vector<64x32xf32>
    %13 = arith.addf %10, %12 : vector<64x32xf32>
    %cst_11 = arith.constant 0.000000e+00 : f32
    %14 = vector.broadcast %cst_11 : f32 to vector<64x32xf32>
    %15 = arith.maximumf %13, %14 : vector<64x32xf32>
    %16 = arith.truncf %15 : vector<64x32xf32> to vector<64x32xbf16>
    %c0_12 = arith.constant 0 : index
    %c0_13 = arith.constant 0 : index
    %17 = vector.load %arg6[%c0_12, %c0_13] : memref<32x4xbf16, #tpu.memory_space<vmem>>, vector<32x4xbf16>
    %cst_14 = arith.constant dense<0.000000e+00> : vector<64x4xf32>
    %18 = tpu.matmul %16, %17, %cst_14 {dimension_numbers = #tpu.dot_dimension_numbers<[1], [0], [0], [1], [0, 0, 1, 1], [], []>} : vector<64x32xbf16>, vector<32x4xbf16>, vector<64x4xf32> -> vector<64x4xf32>
    %c0_15 = arith.constant 0 : index
    %c0_16 = arith.constant 0 : index
    %19 = vector.load %arg7[%c0_15, %c0_16] : memref<1x4xf32, #tpu.memory_space<vmem>>, vector<1x4xf32>
    %20 = vector.broadcast %19 : vector<1x4xf32> to vector<64x4xf32>
    %21 = arith.addf %18, %20 : vector<64x4xf32>
    %c0_17 = arith.constant 0 : index
    %c0_18 = arith.constant 0 : index
    %22 = vector.load %arg8[%c0_17, %c0_18] : memref<64x4xf32, #tpu.memory_space<vmem>>, vector<64x4xf32>
    tpu.vector_store %arg8[%c0_17, %c0_18], %21 {strides = array<i32>} : memref<64x4xf32, #tpu.memory_space<vmem>>, vector<64x4xf32>,
    return
  }
  func.func @transform_0(%arg0: i32) -> (i32, i32) {
    %c0_i32 = arith.constant 0 : i32
    %c0_i32_0 = arith.constant 0 : i32
    return %arg0, %c0_i32 : i32, i32
  }
  func.func @transform_1(%arg0: i32) -> (i32, i32) {
    %c0_i32 = arith.constant 0 : i32
    %c0_i32_0 = arith.constant 0 : i32
    %c0_i32_1 = arith.constant 0 : i32
    return %c0_i32, %c0_i32_0 : i32, i32
  }
  func.func @transform_2(%arg0: i32) -> (i32, i32) {
    %c0_i32 = arith.constant 0 : i32
    %c0_i32_0 = arith.constant 0 : i32
    %c0_i32_1 = arith.constant 0 : i32
    return %c0_i32, %c0_i32_0 : i32, i32
  }
  func.func @transform_3(%arg0: i32) -> (i32, i32) {
    %c0_i32 = arith.constant 0 : i32
    %c0_i32_0 = arith.constant 0 : i32
    %c0_i32_1 = arith.constant 0 : i32
    return %c0_i32, %c0_i32_0 : i32, i32
  }
  func.func @transform_4(%arg0: i32) -> (i32, i32) {
    %c0_i32 = arith.constant 0 : i32
    %c0_i32_0 = arith.constant 0 : i32
    %c0_i32_1 = arith.constant 0 : i32
    return %c0_i32, %c0_i32_0 : i32, i32
  }
  func.func @transform_5(%arg0: i32) -> (i32, i32) {
    %c0_i32 = arith.constant 0 : i32
    %c0_i32_0 = arith.constant 0 : i32
    %c0_i32_1 = arith.constant 0 : i32
    return %c0_i32, %c0_i32_0 : i32, i32
  }
  func.func @transform_6(%arg0: i32) -> (i32, i32) {
    %c0_i32 = arith.constant 0 : i32
    %c0_i32_0 = arith.constant 0 : i32
    %c0_i32_1 = arith.constant 0 : i32
    return %c0_i32, %c0_i32_0 : i32, i32
  }
  func.func @transform_7(%arg0: i32) -> (i32, i32) {
    %c0_i32 = arith.constant 0 : i32
    %c0_i32_0 = arith.constant 0 : i32
    return %arg0, %c0_i32 : i32, i32
  }
}

</mosaic_0001>

<llo_original>
// kernel: model_network_forward.1
$region0: #{model_network_forward.1}
  #allocation0 [shape = 'u32[]', space=smem, size = 0x4, offset = 0x4, fixed_abs, tag = 'smem constant byte address 0x4 - core index']
  #allocation1 [shape = 'u32[144,128]{1,0:T(1,128)}', space=vmem, size = 0x12000, scoped, tag = 'internal scratch']
  %s0 = inlined_call_operand.vmem [shape: bf16[64,12], index: 0, kind: input, shape index: {}]
  %s1 = inlined_call_operand.vmem [shape: bf16[12,32], index: 1, kind: input, shape index: {}]
  %s2 = inlined_call_operand.vmem [shape: f32[1,32], index: 2, kind: input, shape index: {}]
  %s3 = inlined_call_operand.vmem [shape: bf16[32,32], index: 3, kind: input, shape index: {}]
  %s4 = inlined_call_operand.vmem [shape: f32[1,32], index: 4, kind: input, shape index: {}]
  %s5 = inlined_call_operand.vmem [shape: bf16[32,4], index: 5, kind: input, shape index: {}]
  %s6 = inlined_call_operand.vmem [shape: f32[1,4], index: 6, kind: input, shape index: {}]
  %s7 = inlined_call_operand.vmem [shape: f32[64,4], index: 7, kind: output, shape index: {}]
  %s8 = sld [smem:[#allocation0]]
  $region38: #{model_network_forward.1} parent=0
    _
  %s10 = ssub.s32 1, %s8
  %s11 = scalar_select 0, %s10, %s8
  // Predicated region
  $region2: #{model_network_forward.1} parent=0 // pred_check
    _
  $region3: #{model_network_forward.1} parent=0 // pred_check_branch
    %13 = sbr.rel (0) target = $region5
  $region4: #{model_network_forward.1} parent=0 // pred_region
    _
  $region5: #{model_network_forward.1} parent=0 // pred_fallthru
    _
  // Predicated region
  $region6: #{model_network_forward.1} parent=0 // pred_check
    _
  $region7: #{model_network_forward.1} parent=0 // pred_check_branch
    %15 = sbr.rel (0) target = $region9
  $region8: #{model_network_forward.1} parent=0 // pred_region
    _
  $region9: #{model_network_forward.1} parent=0 // pred_fallthru
    _
  // Predicated region
  $region10: #{model_network_forward.1} parent=0 // pred_check
    _
  $region11: #{model_network_forward.1} parent=0 // pred_check_branch
    %17 = sbr.rel (0) target = $region13
  $region12: #{model_network_forward.1} parent=0 // pred_region
    _
  $region13: #{model_network_forward.1} parent=0 // pred_fallthru
    _
  // Predicated region
  $region14: #{model_network_forward.1} parent=0 // pred_check
    _
  $region15: #{model_network_forward.1} parent=0 // pred_check_branch
    %19 = sbr.rel (0) target = $region17
  $region16: #{model_network_forward.1} parent=0 // pred_region
    _
  $region17: #{model_network_forward.1} parent=0 // pred_fallthru
    _
  // Predicated region
  $region18: #{model_network_forward.1} parent=0 // pred_check
    _
  $region19: #{model_network_forward.1} parent=0 // pred_check_branch
    %21 = sbr.rel (0) target = $region21
  $region20: #{model_network_forward.1} parent=0 // pred_region
    _
  $region21: #{model_network_forward.1} parent=0 // pred_fallthru
    _
  // Predicated region
  $region22: #{model_network_forward.1} parent=0 // pred_check
    _
  $region23: #{model_network_forward.1} parent=0 // pred_check_branch
    %23 = sbr.rel (0) target = $region25
  $region24: #{model_network_forward.1} parent=0 // pred_region
    _
  $region25: #{model_network_forward.1} parent=0 // pred_fallthru
    _
  // Predicated region
  $region26: #{model_network_forward.1} parent=0 // pred_check
    _
  $region27: #{model_network_forward.1} parent=0 // pred_check_branch
    %25 = sbr.rel (0) target = $region29
  $region28: #{model_network_forward.1} parent=0 // pred_region
    _
  $region29: #{model_network_forward.1} parent=0 // pred_fallthru
    _
  %v27 = vld [vmem:[%s0] sm:$0xf]
  %v28 = vld [vmem:[%s0 + $0x4] sm:$0xf]
  %v29 = vld [vmem:[%s0 + $0x8] sm:$0xf]
  %v30 = vld [vmem:[%s0 + $0xc] sm:$0xf]
  %v31 = vld [vmem:[%s0 + $0x10] sm:$0xf]
  %v32 = vld [vmem:[%s0 + $0x14] sm:$0xf]
  %v33 = vld [vmem:[%s0 + $0x18] sm:$0xf]
  %v34 = vld [vmem:[%s0 + $0x1c] sm:$0xf]
  %v35 = vld [vmem:[%s1] sm:$0xf]
  %v36 = vld [vmem:[%s1 + $0x4] sm:$0x3]
  %v37 = vld [vmem:[%s2] sm:$0x1]
  %v39 = vlaneseq
  %v40 = vshrl.u32 %v39, 7
  %v41 = vsub.s32 0, %v40
  %v42 = vrot.slane %v37, %v41
  %v52 = vunpack.c.l.b16 %v27
  %v53 = vunpack.c.l.b16 %v28
  %v54 = vunpack.c.l.b16 %v29
  %v55 = vunpack.c.l.b16 %v30
  %v56 = vunpack.c.l.b16 %v31
  %v57 = vunpack.c.l.b16 %v32
  %v58 = vunpack.c.l.b16 %v33
  %v59 = vunpack.c.l.b16 %v34
  %v60 = vpack.c.b16 %v53, %v52
  %v61 = vpack.c.b16 %v55, %v54
  %v62 = vpack.c.b16 %v57, %v56
  %v63 = vpack.c.b16 %v59, %v58
  %v66 = vunpack.c.l.b16 %v35
  %v67 = vunpack.c.l.b16 %v36
  %v68 = vpack.c.b16 %v67, %v66
  %vm69 = vcmask 97280
  %v71 = vsel %vm69, %v60, 0
  %v74 = vsel %vm69, %v61, 0
  %v77 = vsel %vm69, %v62, 0
  %v80 = vsel %vm69, %v63, 0
  %vm82 = vcmask 1045504
  %v84 = vsel %vm82, %v68, 0
  %86 = vmatprep.subr.bf16.mxu0 0
  %87 = vmatpush1.bf16.msra.mxu0 %v84
  %88 = vmatprep.subr.bf16.mxu0 0
  %89 = vmatpush1.bf16.msra.mxu0 0
  %90 = vmatprep.subr.bf16.mxu0 0
  %91 = vmatpush1.bf16.msra.mxu0 0
  %92 = vmatprep.subr.bf16.mxu0 0
  %93 = vmatpush1.bf16.msra.mxu0 0
  %94 = vmatprep.subr.bf16.mxu0 0
  %95 = vmatpush1.bf16.msra.mxu0 0
  %96 = vmatprep.subr.bf16.mxu0 0
  %97 = vmatpush1.bf16.msra.mxu0 0
  %98 = vmatprep.subr.bf16.mxu0 0
  %99 = vmatpush1.bf16.msra.mxu0 0
  %100 = vmatprep.subr.bf16.mxu0 0
  %101 = vmatpush1.bf16.msra.mxu0 0
  %102 = vmatprep.subr.bf16.mxu0 0
  %103 = vmatpush1.bf16.msra.mxu0 0
  %104 = vmatprep.subr.bf16.mxu0 0
  %105 = vmatpush1.bf16.msra.mxu0 0
  %106 = vmatprep.subr.bf16.mxu0 0
  %107 = vmatpush1.bf16.msra.mxu0 0
  %108 = vmatprep.subr.bf16.mxu0 0
  %109 = vmatpush1.bf16.msra.mxu0 0
  %110 = vmatprep.subr.bf16.mxu0 0
  %111 = vmatpush1.bf16.msra.mxu0 0
  %112 = vmatprep.subr.bf16.mxu0 0
  %113 = vmatpush1.bf16.msra.mxu0 0
  %114 = vmatprep.subr.bf16.mxu0 0
  %115 = vmatpush1.bf16.msra.mxu0 0
  %116 = vmatprep.subr.bf16.mxu0 0
  %117 = vmatpush1.bf16.msra.mxu0 0
  %118 = vmatprep.mubr.bf16.mxu0 0
  %119 = vmatmul.mubr.bf16.gmra.mrb[0].mxu0 %v71
  %v120 = vpop.f32.mrb[0].mxu0
  %v121 = vadd.f32 %v42, %v120
  %v122 = vpop.f32.mrb[0].mxu0
  %v123 = vpop.f32.mrb[0].mxu0
  %v124 = vadd.f32 %v42, %v123
  %v125 = vpop.f32.mrb[0].mxu0
  %126 = vmatprep.mubr.bf16.mxu0 0
  %127 = vmatmul.mubr.bf16.gmra.mrb[0].mxu0 %v74
  %v128 = vpop.f32.mrb[0].mxu0
  %v129 = vadd.f32 %v42, %v128
  %v130 = vpop.f32.mrb[0].mxu0
  %v131 = vpop.f32.mrb[0].mxu0
  %v132 = vadd.f32 %v42, %v131
  %v133 = vpop.f32.mrb[0].mxu0
  %134 = vmatprep.mubr.bf16.mxu0 0
  %135 = vmatmul.mubr.bf16.gmra.mrb[0].mxu0 %v77
  %v136 = vpop.f32.mrb[0].mxu0
  %v137 = vadd.f32 %v42, %v136
  %v138 = vpop.f32.mrb[0].mxu0
  %v139 = vpop.f32.mrb[0].mxu0
  %v140 = vadd.f32 %v42, %v139
  %v141 = vpop.f32.mrb[0].mxu0
  %142 = vmatprep.mubr.bf16.mxu0 0
  %143 = vmatmul.mubr.bf16.gmra.mrb[0].mxu0 %v80
  %v144 = vpop.f32.mrb[0].mxu0
  %v145 = vadd.f32 %v42, %v144
  %v146 = vpop.f32.mrb[0].mxu0
  %v147 = vpop.f32.mrb[0].mxu0
  %v148 = vadd.f32 %v42, %v147
  %v149 = vpop.f32.mrb[0].mxu0
  %150 = vdwg.mxu0
  %v151 = vmax.f32 %v121, 0.0
  %v152 = vmax.f32 %v124, 0.0
  %v153 = vmax.f32 %v129, 0.0
  %v154 = vmax.f32 %v132, 0.0
  %v155 = vmax.f32 %v137, 0.0
  %v156 = vmax.f32 %v140, 0.0
  %v157 = vmax.f32 %v145, 0.0
  %v158 = vmax.f32 %v148, 0.0
  %v159 = vpack.c.bf16 %v152, %v151
  %v160 = vpack.c.bf16 %v154, %v153
  %v161 = vpack.c.bf16 %v156, %v155
  %v162 = vpack.c.bf16 %v158, %v157
  %v163 = vld [vmem:[%s3] sm:$0xf]
  %v164 = vld [vmem:[%s3 + $0x4] sm:$0xf]
  %v165 = vld [vmem:[%s3 + $0x8] sm:$0xf]
  %v166 = vld [vmem:[%s3 + $0xc] sm:$0xf]
  %v167 = vld [vmem:[%s4] sm:$0x1]
  %v169 = vlaneseq
  %v170 = vshrl.u32 %v169, 7
  %v171 = vsub.s32 0, %v170
  %v172 = vrot.slane %v167, %v171
  %v178 = vunpack.c.l.b16 %v163
  %v179 = vunpack.c.l.b16 %v164
  %v180 = vunpack.c.l.b16 %v165
  %v181 = vunpack.c.l.b16 %v166
  %v182 = vpack.c.b16 %v179, %v178
  %v183 = vpack.c.b16 %v181, %v180
  %vm186 = vcmask 261120
  %v188 = vsel %vm186, %v159, 0
  %v191 = vsel %vm186, %v160, 0
  %v194 = vsel %vm186, %v161, 0
  %v197 = vsel %vm186, %v162, 0
  %199 = vmatprep.subr.bf16.mxu0 0
  %200 = vmatpush1.bf16.msra.mxu0 %v182
  %201 = vmatprep.subr.bf16.mxu0 0
  %202 = vmatpush1.bf16.msra.mxu0 %v183
  %203 = vmatprep.subr.bf16.mxu0 0
  %204 = vmatpush1.bf16.msra.mxu0 0
  %205 = vmatprep.subr.bf16.mxu0 0
  %206 = vmatpush1.bf16.msra.mxu0 0
  %207 = vmatprep.subr.bf16.mxu0 0
  %208 = vmatpush1.bf16.msra.mxu0 0
  %209 = vmatprep.subr.bf16.mxu0 0
  %210 = vmatpush1.bf16.msra.mxu0 0
  %211 = vmatprep.subr.bf16.mxu0 0
  %212 = vmatpush1.bf16.msra.mxu0 0
  %213 = vmatprep.subr.bf16.mxu0 0
  %214 = vmatpush1.bf16.msra.mxu0 0
  %215 = vmatprep.subr.bf16.mxu0 0
  %216 = vmatpush1.bf16.msra.mxu0 0
  %217 = vmatprep.subr.bf16.mxu0 0
  %218 = vmatpush1.bf16.msra.mxu0 0
  %219 = vmatprep.subr.bf16.mxu0 0
  %220 = vmatpush1.bf16.msra.mxu0 0
  %221 = vmatprep.subr.bf16.mxu0 0
  %222 = vmatpush1.bf16.msra.mxu0 0
  %223 = vmatprep.subr.bf16.mxu0 0
  %224 = vmatpush1.bf16.msra.mxu0 0
  %225 = vmatprep.subr.bf16.mxu0 0
  %226 = vmatpush1.bf16.msra.mxu0 0
  %227 = vmatprep.subr.bf16.mxu0 0
  %228 = vmatpush1.bf16.msra.mxu0 0
  %229 = vmatprep.subr.bf16.mxu0 0
  %230 = vmatpush1.bf16.msra.mxu0 0
  %231 = vmatprep.mubr.bf16.mxu0 0
  %232 = vmatmul.mubr.bf16.gmra.mrb[0].mxu0 %v188
  %v233 = vpop.f32.mrb[0].mxu0
  %v234 = vadd.f32 %v172, %v233
  %v235 = vpop.f32.mrb[0].mxu0
  %v236 = vpop.f32.mrb[0].mxu0
  %v237 = vadd.f32 %v172, %v236
  %v238 = vpop.f32.mrb[0].mxu0
  %239 = vmatprep.mubr.bf16.mxu0 0
  %240 = vmatmul.mubr.bf16.gmra.mrb[0].mxu0 %v191
  %v241 = vpop.f32.mrb[0].mxu0
  %v242 = vadd.f32 %v172, %v241
  %v243 = vpop.f32.mrb[0].mxu0
  %v244 = vpop.f32.mrb[0].mxu0
  %v245 = vadd.f32 %v172, %v244
  %v246 = vpop.f32.mrb[0].mxu0
  %247 = vmatprep.mubr.bf16.mxu0 0
  %248 = vmatmul.mubr.bf16.gmra.mrb[0].mxu0 %v194
  %v249 = vpop.f32.mrb[0].mxu0
  %v250 = vadd.f32 %v172, %v249
  %v251 = vpop.f32.mrb[0].mxu0
  %v252 = vpop.f32.mrb[0].mxu0
  %v253 = vadd.f32 %v172, %v252
  %v254 = vpop.f32.mrb[0].mxu0
  %255 = vmatprep.mubr.bf16.mxu0 0
  %256 = vmatmul.mubr.bf16.gmra.mrb[0].mxu0 %v197
  %v257 = vpop.f32.mrb[0].mxu0
  %v258 = vadd.f32 %v172, %v257
  %v259 = vpop.f32.mrb[0].mxu0
  %v260 = vpop.f32.mrb[0].mxu0
  %v261 = vadd.f32 %v172, %v260
  %v262 = vpop.f32.mrb[0].mxu0
  %263 = vdwg.mxu0
  %v264 = vmax.f32 %v234, 0.0
  %v265 = vmax.f32 %v237, 0.0
  %v266 = vmax.f32 %v242, 0.0
  %v267 = vmax.f32 %v245, 0.0
  %v268 = vmax.f32 %v250, 0.0
  %v269 = vmax.f32 %v253, 0.0
  %v270 = vmax.f32 %v258, 0.0
  %v271 = vmax.f32 %v261, 0.0
  %v272 = vpack.c.bf16 %v265, %v264
  %v273 = vpack.c.bf16 %v267, %v266
  %v274 = vpack.c.bf16 %v269, %v268
  %v275 = vpack.c.bf16 %v271, %v270
  %v276 = vld [vmem:[%s5] sm:$0xf]
  %v277 = vld [vmem:[%s5 + $0x4] sm:$0xf]
  %v278 = vld [vmem:[%s5 + $0x8] sm:$0xf]
  %v279 = vld [vmem:[%s5 + $0xc] sm:$0xf]
  %v280 = vld [vmem:[%s6] sm:$0x1]
  %v282 = vlaneseq
  %v283 = vshrl.u32 %v282, 7
  %v284 = vsub.s32 0, %v283
  %v285 = vrot.slane %v280, %v284
  %v291 = vunpack.c.l.b16 %v276
  %v292 = vunpack.c.l.b16 %v277
  %v293 = vunpack.c.l.b16 %v278
  %v294 = vunpack.c.l.b16 %v279
  %v295 = vpack.c.b16 %v292, %v291
  %v296 = vpack.c.b16 %v294, %v293
  %v300 = vsel %vm186, %v272, 0
  %v303 = vsel %vm186, %v273, 0
  %v306 = vsel %vm186, %v274, 0
  %v309 = vsel %vm186, %v275, 0
  %311 = vmatprep.subr.bf16.mxu0 0
  %312 = vmatpush1.bf16.msra.mxu0 %v295
  %313 = vmatprep.subr.bf16.mxu0 0
  %314 = vmatpush1.bf16.msra.mxu0 %v296
  %315 = vmatprep.subr.bf16.mxu0 0
  %316 = vmatpush1.bf16.msra.mxu0 0
  %317 = vmatprep.subr.bf16.mxu0 0
  %318 = vmatpush1.bf16.msra.mxu0 0
  %319 = vmatprep.subr.bf16.mxu0 0
  %320 = vmatpush1.bf16.msra.mxu0 0
  %321 = vmatprep.subr.bf16.mxu0 0
  %322 = vmatpush1.bf16.msra.mxu0 0
  %323 = vmatprep.subr.bf16.mxu0 0
  %324 = vmatpush1.bf16.msra.mxu0 0
  %325 = vmatprep.subr.bf16.mxu0 0
  %326 = vmatpush1.bf16.msra.mxu0 0
  %327 = vmatprep.subr.bf16.mxu0 0
  %328 = vmatpush1.bf16.msra.mxu0 0
  %329 = vmatprep.subr.bf16.mxu0 0
  %330 = vmatpush1.bf16.msra.mxu0 0
  %331 = vmatprep.subr.bf16.mxu0 0
  %332 = vmatpush1.bf16.msra.mxu0 0
  %333 = vmatprep.subr.bf16.mxu0 0
  %334 = vmatpush1.bf16.msra.mxu0 0
  %335 = vmatprep.subr.bf16.mxu0 0
  %336 = vmatpush1.bf16.msra.mxu0 0
  %337 = vmatprep.subr.bf16.mxu0 0
  %338 = vmatpush1.bf16.msra.mxu0 0
  %339 = vmatprep.subr.bf16.mxu0 0
  %340 = vmatpush1.bf16.msra.mxu0 0
  %341 = vmatprep.subr.bf16.mxu0 0
  %342 = vmatpush1.bf16.msra.mxu0 0
  %343 = vmatprep.mubr.bf16.mxu0 0
  %344 = vmatmul.mubr.bf16.gmra.mrb[0].mxu0 %v300
  %v345 = vpop.f32.mrb[0].mxu0
  %v346 = vadd.f32 %v285, %v345
  %v347 = vpop.f32.mrb[0].mxu0
  %v348 = vpop.f32.mrb[0].mxu0
  %v349 = vadd.f32 %v285, %v348
  %v350 = vpop.f32.mrb[0].mxu0
  %351 = vmatprep.mubr.bf16.mxu0 0
  %352 = vmatmul.mubr.bf16.gmra.mrb[0].mxu0 %v303
  %v353 = vpop.f32.mrb[0].mxu0
  %v354 = vadd.f32 %v285, %v353
  %v355 = vpop.f32.mrb[0].mxu0
  %v356 = vpop.f32.mrb[0].mxu0
  %v357 = vadd.f32 %v285, %v356
  %v358 = vpop.f32.mrb[0].mxu0
  %359 = vmatprep.mubr.bf16.mxu0 0
  %360 = vmatmul.mubr.bf16.gmra.mrb[0].mxu0 %v306
  %v361 = vpop.f32.mrb[0].mxu0
  %v362 = vadd.f32 %v285, %v361
  %v363 = vpop.f32.mrb[0].mxu0
  %v364 = vpop.f32.mrb[0].mxu0
  %v365 = vadd.f32 %v285, %v364
  %v366 = vpop.f32.mrb[0].mxu0
  %367 = vmatprep.mubr.bf16.mxu0 0
  %368 = vmatmul.mubr.bf16.gmra.mrb[0].mxu0 %v309
  %v369 = vpop.f32.mrb[0].mxu0
  %v370 = vadd.f32 %v285, %v369
  %v371 = vpop.f32.mrb[0].mxu0
  %v372 = vpop.f32.mrb[0].mxu0
  %v373 = vadd.f32 %v285, %v372
  %v374 = vpop.f32.mrb[0].mxu0
  %375 = vdwg.mxu0
  %vm376 = vcmask 31744
  %377 = vst.msk [vmem:[%s7] sm:$0xff] %vm376, %v346
  %378 = vst.msk [vmem:[%s7 + $0x8] sm:$0xff] %vm376, %v349
  %379 = vst.msk [vmem:[%s7 + $0x10] sm:$0xff] %vm376, %v354
  %380 = vst.msk [vmem:[%s7 + $0x18] sm:$0xff] %vm376, %v357
  %381 = vst.msk [vmem:[%s7 + $0x20] sm:$0xff] %vm376, %v362
  %382 = vst.msk [vmem:[%s7 + $0x28] sm:$0xff] %vm376, %v365
  %383 = vst.msk [vmem:[%s7 + $0x30] sm:$0xff] %vm376, %v370
  %384 = vst.msk [vmem:[%s7 + $0x38] sm:$0xff] %vm376, %v373
  // Predicated region
  $region30: #{model_network_forward.1} parent=0 // pred_check
    _
  $region31: #{model_network_forward.1} parent=0 // pred_check_branch
    %386 = sbr.rel (0) target = $region33
  $region32: #{model_network_forward.1} parent=0 // pred_region
    _
  $region33: #{model_network_forward.1} parent=0 // pred_fallthru
    _
  // Predicated region
  $region34: #{model_network_forward.1} parent=0 // pred_check
    _
  $region35: #{model_network_forward.1} parent=0 // pred_check_branch
    %388 = sbr.rel (0) target = $region37
  $region36: #{model_network_forward.1} parent=0 // pred_region
    _
  $region37: #{model_network_forward.1} parent=0 // pred_fallthru
    _

</llo_original>
